<compile_context>
chip_gen: v5e
topology: v5e:2x2
jax: 0.10.0
libtpu: 0.0.40
codegen_flags: <defaults>
</compile_context>

<pallas_src>
import jax
import jax.numpy as jnp
from jax.experimental import pallas as pl
from jax.experimental.pallas import tpu as pltpu


def _round_up(x, m):
    return ((x + m - 1) // m) * m


def _mlp_kernel(x_ref, w1_ref, w2_ref, w3_ref, y_ref):
    """One batch tile of the fused 3-layer bias-free MLP.

    x_ref : (TB, D_in)  input rows in the caller's dtype (cast in-kernel)
    w1_ref: (D_in, HP)  bf16 linear1 weight, (in, out) layout, cols zero-padded
    w2_ref: (HP, HP)    bf16 linear2 weight, zero-padded
    w3_ref: (HP, CP)    bf16 fc weight, zero-padded
    y_ref : (TB, CP)    logits (padded classes; sliced in the wrapper)
    """
    w_dtype = w1_ref.dtype
    x = x_ref[...].astype(w_dtype)                # cast in-kernel (VPU, hidden under MXU/DMA)
    h = jnp.dot(x, w1_ref[...], preferred_element_type=jnp.float32)
    h = jnp.maximum(h, 0.0)                       # ReLU on the f32 accumulator
    h = jnp.dot(h.astype(w_dtype), w2_ref[...], preferred_element_type=jnp.float32)
    h = jnp.maximum(h, 0.0)
    y = jnp.dot(h.astype(w_dtype), w3_ref[...], preferred_element_type=jnp.float32)
    y_ref[...] = y.astype(y_ref.dtype)


def prepare_params(w1, w2, w3, compute_dtype=jnp.bfloat16):
    """One-time weight prep (kept OUT of the per-call path).

    Takes PyTorch-layout (out_features, in_features) weights, transposes them
    once to (in, out), zero-pads hidden / class dims up to multiples of 128
    (lane-dense blocks, unmasked stores) and casts to the compute dtype.
    Zero padding is exact: padded hidden units are relu(0)=0 and padded class
    columns are sliced off, so the logits are unchanged.
    """
    n_hidden, d_in = w1.shape
    assert w2.shape == (n_hidden, n_hidden)
    num_classes = w3.shape[0]
    assert w3.shape == (num_classes, n_hidden)

    hp = _round_up(n_hidden, 128)
    cp = _round_up(num_classes, 128)

    w1t = jnp.zeros((d_in, hp), compute_dtype).at[:, :n_hidden].set(
        w1.T.astype(compute_dtype))
    w2t = jnp.zeros((hp, hp), compute_dtype).at[:n_hidden, :n_hidden].set(
        w2.T.astype(compute_dtype))
    w3t = jnp.zeros((hp, cp), compute_dtype).at[:n_hidden, :num_classes].set(
        w3.T.astype(compute_dtype))
    return w1t, w2t, w3t


def net_forward(x_nchw, params, num_classes, *, block_batch=256,
                max_single_block=512, out_dtype=jnp.float32):
    """Forward pass of Net.  `params` comes from prepare_params (called once)."""
    w1t, w2t, w3t = params
    d_in, hp = w1t.shape
    cp = w3t.shape[1]

    B = x_nchw.shape[0]
    # Same flattening as torch's x.view(B, -1) on NCHW; no cast, no pad here.
    x_flat = x_nchw.reshape(B, -1)
    assert x_flat.shape[1] == d_in

    # Batch tile: one grid step for small B; big (>=block_batch) tiles for
    # large B.  Always a multiple of 8 (sublane constraint), regardless of the
    # caller's block_batch.
    if B <= max(max_single_block, 8):
        tb = _round_up(B, 8)
    else:
        tb = _round_up(max(8, min(block_batch, B)), 8)
    grid = (pl.cdiv(B, tb),)

    # VMEM budget from the actual tile sizes: single-buffered weights,
    # double-buffered x / y tiles, f32 intermediates; 2x headroom, capped well
    # under the 64 MiB v7x per-TC VMEM (v5e default scoped cap is only 16 MiB,
    # so the explicit limit matters there too).
    bpe_w = jnp.dtype(w1t.dtype).itemsize
    bpe_x = jnp.dtype(x_flat.dtype).itemsize
    bpe_y = jnp.dtype(out_dtype).itemsize
    w_bytes = (d_in * hp + hp * hp + hp * cp) * bpe_w
    x_tile = tb * d_in * bpe_x
    y_tile = tb * cp * bpe_y
    inter = 2 * tb * hp * 4
    need = w_bytes + 2 * x_tile + 2 * y_tile + inter
    vmem_limit = int(min(max(2 * need + (2 << 20), 16 << 20), 48 << 20))

    def call(single_buffer_weights):
        w_kwargs = {}
        if single_buffer_weights:
            # Weights are grid-invariant: double-buffering them is pure waste.
            w_kwargs = dict(pipeline_mode=pl.Buffered(1))
        in_specs = [
            pl.BlockSpec((tb, d_in), lambda i: (i, 0)),
            pl.BlockSpec((d_in, hp), lambda i: (0, 0), **w_kwargs),
            pl.BlockSpec((hp, hp), lambda i: (0, 0), **w_kwargs),
            pl.BlockSpec((hp, cp), lambda i: (0, 0), **w_kwargs),
        ]
        out_specs = pl.BlockSpec((tb, cp), lambda i: (i, 0))
        return pl.pallas_call(
            _mlp_kernel,
            out_shape=jax.ShapeDtypeStruct((B, cp), out_dtype),
            grid=grid,
            in_specs=in_specs,
            out_specs=out_specs,
            compiler_params=pltpu.CompilerParams(
                dimension_semantics=("parallel",),
                vmem_limit_bytes=vmem_limit,
            ),
        )(x_flat, w1t, w2t, w3t)

    try:
        out = call(single_buffer_weights=True)
    except Exception:
        # Eager-mode fallback if this jax build rejects Buffered(1) single
        # buffering; default double-buffered weight specs remain correct.
        out = call(single_buffer_weights=False)

    return out[:, :num_classes]


def _reference_forward_f32(x_nchw, w1, w2, w3):
    # Pure-JAX f32 reference matching the PyTorch semantics exactly.
    h = x_nchw.reshape(x_nchw.shape[0], -1)
    h = jnp.maximum(h @ w1.T, 0.0)
    h = jnp.maximum(h @ w2.T, 0.0)
    return h @ w3.T


def _reference_forward_bf16(x_nchw, w1, w2, w3):
    # Matched-precision reference: bf16 operands, f32 accumulation (as in kernel).
    bf = jnp.bfloat16
    h = x_nchw.reshape(x_nchw.shape[0], -1).astype(bf)
    h = jnp.maximum(
        jnp.dot(h, w1.T.astype(bf), preferred_element_type=jnp.float32), 0.0)
    h = jnp.maximum(
        jnp.dot(h.astype(bf), w2.T.astype(bf), preferred_element_type=jnp.float32), 0.0)
    return jnp.dot(h.astype(bf), w3.T.astype(bf), preferred_element_type=jnp.float32)


if __name__ == "__main__":
    # Small shapes consistent with Net: inputsize = (ncha, size, size).
    batch = 12                    # deliberately not a multiple of 8
    ncha, size = 1, 16            # flattened input dim = 256
    n_hidden = 32
    num_classes = 10

    key = jax.random.PRNGKey(0)
    kx, k1, k2, k3 = jax.random.split(key, 4)

    x = jax.random.normal(kx, (batch, ncha, size, size), dtype=jnp.float32)

    d_in = ncha * size * size
    # PyTorch Linear weight layout: (out_features, in_features).
    w1 = jax.random.normal(k1, (n_hidden, d_in), jnp.float32) * (1.0 / d_in ** 0.5)
    w2 = jax.random.normal(k2, (n_hidden, n_hidden), jnp.float32) * (1.0 / n_hidden ** 0.5)
    w3 = jax.random.normal(k3, (num_classes, n_hidden), jnp.float32) * (1.0 / n_hidden ** 0.5)

    params = prepare_params(w1, w2, w3)              # one-time weight prep

    # Default fast path: single grid step (tb = round_up(B, 8)).
    y = net_forward(x, params, num_classes)
    y = jax.block_until_ready(y)
    assert y.shape == (batch, num_classes)

    y_bf16_ref = _reference_forward_bf16(x, w1, w2, w3)
    y_f32_ref = _reference_forward_f32(x, w1, w2, w3)
    assert jnp.allclose(y, y_bf16_ref, atol=5e-3, rtol=5e-3), \
        "Pallas output mismatch vs matched-precision (bf16) reference"
    assert jnp.allclose(y, y_f32_ref, atol=1e-1, rtol=5e-2), \
        "Pallas output mismatch vs f32 reference"

    # Correctness-only check of the tiled / ragged-last-block path (grid of 2,
    # last block masked); not the performance configuration.
    y_tiled = net_forward(x, params, num_classes, block_batch=8, max_single_block=0)
    y_tiled = jax.block_until_ready(y_tiled)
    assert jnp.allclose(y, y_tiled, atol=1e-5, rtol=1e-5), \
        "Tiled-grid output mismatch vs single-step output"

    print("KERNEL_OK")
</pallas_src>

<mosaic_0001>
module attributes {stable_mosaic.version = 11 : i64} {
  func.func @_mlp_kernel(%arg0: i32, %arg1: memref<16x256xf32, #tpu.memory_space<vmem>>, %arg2: memref<256x128xbf16, #tpu.memory_space<vmem>>, %arg3: memref<128x128xbf16, #tpu.memory_space<vmem>>, %arg4: memref<128x128xbf16, #tpu.memory_space<vmem>>, %arg5: memref<16x128xf32, #tpu.memory_space<vmem>>) attributes {dimension_semantics = [#tpu.dimension_semantics<parallel>], iteration_bounds = array<i64: 1>, scalar_prefetch = 0 : i64, scratch_operands = 0 : i64, tpu.core_type = #tpu.core_type<tc>, window_params = [{transform_indices = @transform_0, window_bounds = array<i64: 16, 256>}, {pipeline_mode = #tpu.pipeline_mode<synchronous>, transform_indices = @transform_1, window_bounds = array<i64: 256, 128>}, {pipeline_mode = #tpu.pipeline_mode<synchronous>, transform_indices = @transform_2, window_bounds = array<i64: 128, 128>}, {pipeline_mode = #tpu.pipeline_mode<synchronous>, transform_indices = @transform_3, window_bounds = array<i64: 128, 128>}, {transform_indices = @transform_4, window_bounds = array<i64: 16, 128>}]} {
    %c0 = arith.constant 0 : index
    %c0_0 = arith.constant 0 : index
    %0 = vector.load %arg1[%c0, %c0_0] : memref<16x256xf32, #tpu.memory_space<vmem>>, vector<16x256xf32>
    %1 = arith.truncf %0 : vector<16x256xf32> to vector<16x256xbf16>
    %c0_1 = arith.constant 0 : index
    %c0_2 = arith.constant 0 : index
    %2 = vector.load %arg2[%c0_1, %c0_2] : memref<256x128xbf16, #tpu.memory_space<vmem>>, vector<256x128xbf16>
    %cst = arith.constant dense<0.000000e+00> : vector<16x128xf32>
    %3 = tpu.matmul %1, %2, %cst {dimension_numbers = #tpu.dot_dimension_numbers<[1], [0], [0], [1], [0, 0, 1, 1], [], []>} : vector<16x256xbf16>, vector<256x128xbf16>, vector<16x128xf32> -> vector<16x128xf32>
    %cst_3 = arith.constant 0.000000e+00 : f32
    %4 = vector.broadcast %cst_3 : f32 to vector<16x128xf32>
    %5 = arith.maximumf %3, %4 : vector<16x128xf32>
    %6 = arith.truncf %5 : vector<16x128xf32> to vector<16x128xbf16>
    %c0_4 = arith.constant 0 : index
    %c0_5 = arith.constant 0 : index
    %7 = vector.load %arg3[%c0_4, %c0_5] : memref<128x128xbf16, #tpu.memory_space<vmem>>, vector<128x128xbf16>
    %cst_6 = arith.constant dense<0.000000e+00> : vector<16x128xf32>
    %8 = tpu.matmul %6, %7, %cst_6 {dimension_numbers = #tpu.dot_dimension_numbers<[1], [0], [0], [1], [0, 0, 1, 1], [], []>} : vector<16x128xbf16>, vector<128x128xbf16>, vector<16x128xf32> -> vector<16x128xf32>
    %cst_7 = arith.constant 0.000000e+00 : f32
    %9 = vector.broadcast %cst_7 : f32 to vector<16x128xf32>
    %10 = arith.maximumf %8, %9 : vector<16x128xf32>
    %11 = arith.truncf %10 : vector<16x128xf32> to vector<16x128xbf16>
    %c0_8 = arith.constant 0 : index
    %c0_9 = arith.constant 0 : index
    %12 = vector.load %arg4[%c0_8, %c0_9] : memref<128x128xbf16, #tpu.memory_space<vmem>>, vector<128x128xbf16>
    %cst_10 = arith.constant dense<0.000000e+00> : vector<16x128xf32>
    %13 = tpu.matmul %11, %12, %cst_10 {dimension_numbers = #tpu.dot_dimension_numbers<[1], [0], [0], [1], [0, 0, 1, 1], [], []>} : vector<16x128xbf16>, vector<128x128xbf16>, vector<16x128xf32> -> vector<16x128xf32>
    %c0_11 = arith.constant 0 : index
    %c0_12 = arith.constant 0 : index
    %14 = vector.load %arg5[%c0_11, %c0_12] : memref<16x128xf32, #tpu.memory_space<vmem>>, vector<16x128xf32>
    tpu.vector_store %arg5[%c0_11, %c0_12], %13 {strides = array<i32>} : memref<16x128xf32, #tpu.memory_space<vmem>>, vector<16x128xf32>,
    return
  }
  func.func @transform_0(%arg0: i32) -> (i32, i32) {
    %c0_i32 = arith.constant 0 : i32
    %c0_i32_0 = arith.constant 0 : i32
    return %arg0, %c0_i32 : i32, i32
  }
  func.func @transform_1(%arg0: i32) -> (i32, i32) {
    %c0_i32 = arith.constant 0 : i32
    %c0_i32_0 = arith.constant 0 : i32
    %c0_i32_1 = arith.constant 0 : i32
    return %c0_i32, %c0_i32_0 : i32, i32
  }
  func.func @transform_2(%arg0: i32) -> (i32, i32) {
    %c0_i32 = arith.constant 0 : i32
    %c0_i32_0 = arith.constant 0 : i32
    %c0_i32_1 = arith.constant 0 : i32
    return %c0_i32, %c0_i32_0 : i32, i32
  }
  func.func @transform_3(%arg0: i32) -> (i32, i32) {
    %c0_i32 = arith.constant 0 : i32
    %c0_i32_0 = arith.constant 0 : i32
    %c0_i32_1 = arith.constant 0 : i32
    return %c0_i32, %c0_i32_0 : i32, i32
  }
  func.func @transform_4(%arg0: i32) -> (i32, i32) {
    %c0_i32 = arith.constant 0 : i32
    %c0_i32_0 = arith.constant 0 : i32
    return %arg0, %c0_i32 : i32, i32
  }
}

module attributes {stable_mosaic.version = 11 : i64} {
  func.func @_mlp_kernel(%arg0: i32, %arg1: memref<16x256xf32, #tpu.memory_space<vmem>>, %arg2: memref<256x128xbf16, #tpu.memory_space<vmem>>, %arg3: memref<128x128xbf16, #tpu.memory_space<vmem>>, %arg4: memref<128x128xbf16, #tpu.memory_space<vmem>>, %arg5: memref<16x128xf32, #tpu.memory_space<vmem>>) attributes {dimension_semantics = [#tpu.dimension_semantics<parallel>], iteration_bounds = array<i64: 1>, scalar_prefetch = 0 : i64, scratch_operands = 0 : i64, tpu.core_type = #tpu.core_type<tc>, window_params = [{transform_indices = @transform_0, window_bounds = array<i64: 16, 256>}, {pipeline_mode = #tpu.pipeline_mode<synchronous>, transform_indices = @transform_1, window_bounds = array<i64: 256, 128>}, {pipeline_mode = #tpu.pipeline_mode<synchronous>, transform_indices = @transform_2, window_bounds = array<i64: 128, 128>}, {pipeline_mode = #tpu.pipeline_mode<synchronous>, transform_indices = @transform_3, window_bounds = array<i64: 128, 128>}, {transform_indices = @transform_4, window_bounds = array<i64: 16, 128>}]} {
    %c0 = arith.constant 0 : index
    %c0_0 = arith.constant 0 : index
    %0 = vector.load %arg1[%c0, %c0_0] : memref<16x256xf32, #tpu.memory_space<vmem>>, vector<16x256xf32>
    %1 = arith.truncf %0 : vector<16x256xf32> to vector<16x256xbf16>
    %c0_1 = arith.constant 0 : index
    %c0_2 = arith.constant 0 : index
    %2 = vector.load %arg2[%c0_1, %c0_2] : memref<256x128xbf16, #tpu.memory_space<vmem>>, vector<256x128xbf16>
    %cst = arith.constant dense<0.000000e+00> : vector<16x128xf32>
    %3 = tpu.matmul %1, %2, %cst {dimension_numbers = #tpu.dot_dimension_numbers<[1], [0], [0], [1], [0, 0, 1, 1], [], []>} : vector<16x256xbf16>, vector<256x128xbf16>, vector<16x128xf32> -> vector<16x128xf32>
    %cst_3 = arith.constant 0.000000e+00 : f32
    %4 = vector.broadcast %cst_3 : f32 to vector<16x128xf32>
    %5 = arith.maximumf %3, %4 : vector<16x128xf32>
    %6 = arith.truncf %5 : vector<16x128xf32> to vector<16x128xbf16>
    %c0_4 = arith.constant 0 : index
    %c0_5 = arith.constant 0 : index
    %7 = vector.load %arg3[%c0_4, %c0_5] : memref<128x128xbf16, #tpu.memory_space<vmem>>, vector<128x128xbf16>
    %cst_6 = arith.constant dense<0.000000e+00> : vector<16x128xf32>
    %8 = tpu.matmul %6, %7, %cst_6 {dimension_numbers = #tpu.dot_dimension_numbers<[1], [0], [0], [1], [0, 0, 1, 1], [], []>} : vector<16x128xbf16>, vector<128x128xbf16>, vector<16x128xf32> -> vector<16x128xf32>
    %cst_7 = arith.constant 0.000000e+00 : f32
    %9 = vector.broadcast %cst_7 : f32 to vector<16x128xf32>
    %10 = arith.maximumf %8, %9 : vector<16x128xf32>
    %11 = arith.truncf %10 : vector<16x128xf32> to vector<16x128xbf16>
    %c0_8 = arith.constant 0 : index
    %c0_9 = arith.constant 0 : index
    %12 = vector.load %arg4[%c0_8, %c0_9] : memref<128x128xbf16, #tpu.memory_space<vmem>>, vector<128x128xbf16>
    %cst_10 = arith.constant dense<0.000000e+00> : vector<16x128xf32>
    %13 = tpu.matmul %11, %12, %cst_10 {dimension_numbers = #tpu.dot_dimension_numbers<[1], [0], [0], [1], [0, 0, 1, 1], [], []>} : vector<16x128xbf16>, vector<128x128xbf16>, vector<16x128xf32> -> vector<16x128xf32>
    %c0_11 = arith.constant 0 : index
    %c0_12 = arith.constant 0 : index
    %14 = vector.load %arg5[%c0_11, %c0_12] : memref<16x128xf32, #tpu.memory_space<vmem>>, vector<16x128xf32>
    tpu.vector_store %arg5[%c0_11, %c0_12], %13 {strides = array<i32>} : memref<16x128xf32, #tpu.memory_space<vmem>>, vector<16x128xf32>,
    return
  }
  func.func @transform_0(%arg0: i32) -> (i32, i32) {
    %c0_i32 = arith.constant 0 : i32
    %c0_i32_0 = arith.constant 0 : i32
    return %arg0, %c0_i32 : i32, i32
  }
  func.func @transform_1(%arg0: i32) -> (i32, i32) {
    %c0_i32 = arith.constant 0 : i32
    %c0_i32_0 = arith.constant 0 : i32
    %c0_i32_1 = arith.constant 0 : i32
    return %c0_i32, %c0_i32_0 : i32, i32
  }
  func.func @transform_2(%arg0: i32) -> (i32, i32) {
    %c0_i32 = arith.constant 0 : i32
    %c0_i32_0 = arith.constant 0 : i32
    %c0_i32_1 = arith.constant 0 : i32
    return %c0_i32, %c0_i32_0 : i32, i32
  }
  func.func @transform_3(%arg0: i32) -> (i32, i32) {
    %c0_i32 = arith.constant 0 : i32
    %c0_i32_0 = arith.constant 0 : i32
    %c0_i32_1 = arith.constant 0 : i32
    return %c0_i32, %c0_i32_0 : i32, i32
  }
  func.func @transform_4(%arg0: i32) -> (i32, i32) {
    %c0_i32 = arith.constant 0 : i32
    %c0_i32_0 = arith.constant 0 : i32
    return %arg0, %c0_i32 : i32, i32
  }
}

</mosaic_0001>

<llo_original>
// kernel: tpu_custom_call.1
$region0: #{tpu_custom_call.1}
  #allocation0 [shape = 'u32[]', space=smem, size = 0x4, offset = 0x4, fixed_abs, tag = 'smem constant byte address 0x4 - core index']
  #allocation1 [shape = 'u32[72,128]{1,0:T(1,128)}', space=vmem, size = 0x9000, scoped, tag = 'internal scratch']
  %s0 = inlined_call_operand.hbm [shape: f32[12,256], index: 0, kind: input, shape index: {}]
  %s1 = inlined_call_operand.hbm [shape: bf16[256,128], index: 1, kind: input, shape index: {}]
  %s2 = inlined_call_operand.hbm [shape: bf16[128,128], index: 2, kind: input, shape index: {}]
  %s3 = inlined_call_operand.hbm [shape: bf16[128,128], index: 3, kind: input, shape index: {}]
  %s4 = inlined_call_operand.hbm [shape: f32[12,128], index: 4, kind: output, shape index: {}]
  %s5 = sld [smem:[#allocation0]]
  $region42: #{tpu_custom_call.1} parent=0
    _
  %s7 = ssub.s32 1, %s5
  %s8 = scalar_select 0, %s7, %s5
  $region1: #{tpu_custom_call.1} parent=0
    #allocation2 [shape = 'u8[16384]{0}', space=vmem, size = 0x4000, scoped, tag = 'input window, operand 0, single buffered']
    #allocation3 [shape = 's32[1]{0}', space=sflag, size = 0x4, scoped, tag = 'scoped memory for tpu_custom_call.1']
    #allocation4 [shape = 's32[1]{0}', space=sflag, size = 0x4, scoped, tag = 'scoped memory for tpu_custom_call.1']
    #allocation5 [shape = 'u8[65536]{0}', space=vmem, size = 0x10000, scoped, tag = 'input window, operand 1, single buffered']
    #allocation6 [shape = 's32[1]{0}', space=sflag, size = 0x4, scoped, tag = 'scoped memory for tpu_custom_call.1']
    #allocation7 [shape = 'u8[32768]{0}', space=vmem, size = 0x8000, scoped, tag = 'input window, operand 2, single buffered']
    #allocation8 [shape = 'u8[32768]{0}', space=vmem, size = 0x8000, scoped, tag = 'input window, operand 3, single buffered']
    #allocation9 [shape = 's32[1]{0}', space=sflag, size = 0x4, scoped, tag = 'scoped memory for tpu_custom_call.1']
    #allocation10 [shape = 'u8[8192]{0}', space=vmem, size = 0x2000, scoped, tag = 'output window, operand 0, single buffered']
    %9 = vsyncpa [#allocation3], 0
    %10 = vsyncpa [#allocation6], 0
    %11 = vsyncpa [#allocation9], 0
    %12 = vsyncpa [#allocation4], 0
    // Predicated region
    $region2: #{tpu_custom_call.1} parent=1 // pred_check
      _
    $region3: #{tpu_custom_call.1} parent=1 // pred_check_branch
      %14 = sbr.rel (0) target = $region5
    $region4: #{tpu_custom_call.1} parent=1 // pred_region
      %16 = vsyncadd [#allocation3], 0
      %s17 = sshll.u32 %s0, 4
      %s18 = int_to_ptr.hbm [resolvable:$true] %s17
      %s19 = sshll.u32 [#allocation2], 4
      %s20 = int_to_ptr.vmem [resolvable:$true] %s19
      %25 = dma.hbm_to_vmem [thread:$0]  %s18, 512, %s20, [#allocation3], 256, 256, 16
    $region5: #{tpu_custom_call.1} parent=1 // pred_fallthru
      _
    // Predicated region
    $region6: #{tpu_custom_call.1} parent=1 // pred_check
      _
    $region7: #{tpu_custom_call.1} parent=1 // pred_check_branch
      %27 = sbr.rel (0) target = $region9
    $region8: #{tpu_custom_call.1} parent=1 // pred_region
      %29 = vsyncadd [#allocation6], 0
      %s30 = sshll.u32 %s1, 4
      %s31 = int_to_ptr.hbm [resolvable:$true] %s30
      %s32 = sshll.u32 [#allocation5], 4
      %s33 = int_to_ptr.vmem [resolvable:$true] %s32
      %38 = dma.hbm_to_vmem [thread:$0]  %s31, 2048, %s33, [#allocation6], 64, 64, 4
    $region9: #{tpu_custom_call.1} parent=1 // pred_fallthru
      _
    // Predicated region
    $region10: #{tpu_custom_call.1} parent=1 // pred_check
      _
    $region11: #{tpu_custom_call.1} parent=1 // pred_check_branch
      %40 = sbr.rel (0) target = $region13
    $region12: #{tpu_custom_call.1} parent=1 // pred_region
      %42 = vsyncadd [#allocation6], 0
      %s43 = sshll.u32 %s2, 4
      %s44 = int_to_ptr.hbm [resolvable:$true] %s43
      %s45 = sshll.u32 [#allocation7], 4
      %s46 = int_to_ptr.vmem [resolvable:$true] %s45
      %51 = dma.hbm_to_vmem [thread:$0]  %s44, 1024, %s46, [#allocation6], 64, 64, 4
    $region13: #{tpu_custom_call.1} parent=1 // pred_fallthru
      _
    // Predicated region
    $region14: #{tpu_custom_call.1} parent=1 // pred_check
      _
    $region15: #{tpu_custom_call.1} parent=1 // pred_check_branch
      %53 = sbr.rel (0) target = $region17
    $region16: #{tpu_custom_call.1} parent=1 // pred_region
      %55 = vsyncadd [#allocation9], 0
      %s56 = sshll.u32 %s3, 4
      %s57 = int_to_ptr.hbm [resolvable:$true] %s56
      %s58 = sshll.u32 [#allocation8], 4
      %s59 = int_to_ptr.vmem [resolvable:$true] %s58
      %64 = dma.hbm_to_vmem [thread:$0]  %s57, 1024, %s59, [#allocation9], 64, 64, 4
    $region17: #{tpu_custom_call.1} parent=1 // pred_fallthru
      _
    // Predicated region
    $region18: #{tpu_custom_call.1} parent=1 // pred_check
      _
    $region19: #{tpu_custom_call.1} parent=1 // pred_check_branch
      %66 = sbr.rel (0) target = $region21
    $region20: #{tpu_custom_call.1} parent=1 // pred_region
      %68 = dma.done [#allocation3], 512
    $region21: #{tpu_custom_call.1} parent=1 // pred_fallthru
      _
    // Predicated region
    $region22: #{tpu_custom_call.1} parent=1 // pred_check
      _
    $region23: #{tpu_custom_call.1} parent=1 // pred_check_branch
      %70 = sbr.rel (0) target = $region25
    $region24: #{tpu_custom_call.1} parent=1 // pred_region
      %72 = dma.done [#allocation6], 2048
    $region25: #{tpu_custom_call.1} parent=1 // pred_fallthru
      _
    // Predicated region
    $region26: #{tpu_custom_call.1} parent=1 // pred_check
      _
    $region27: #{tpu_custom_call.1} parent=1 // pred_check_branch
      %74 = sbr.rel (0) target = $region29
    $region28: #{tpu_custom_call.1} parent=1 // pred_region
      %76 = dma.done [#allocation6], 1024
    $region29: #{tpu_custom_call.1} parent=1 // pred_fallthru
      _
    // Predicated region
    $region30: #{tpu_custom_call.1} parent=1 // pred_check
      _
    $region31: #{tpu_custom_call.1} parent=1 // pred_check_branch
      %78 = sbr.rel (0) target = $region33
    $region32: #{tpu_custom_call.1} parent=1 // pred_region
      %80 = dma.done [#allocation9], 1024
    $region33: #{tpu_custom_call.1} parent=1 // pred_fallthru
      _
    %v81 = vld [vmem:[#allocation2] sm:$0xff]
    %v82 = vld [vmem:[#allocation2 + $0x8] sm:$0xff]
    %v83 = vld [vmem:[#allocation2 + $0x10] sm:$0xff]
    %v84 = vld [vmem:[#allocation2 + $0x18] sm:$0xff]
    %v85 = vpack.c.bf16 %v83, %v81
    %v86 = vpack.c.bf16 %v84, %v82
    %v87 = vld [vmem:[#allocation5] sm:$0xf]
    %v88 = vld [vmem:[#allocation5 + $0x4] sm:$0xf]
    %v89 = vld [vmem:[#allocation5 + $0x8] sm:$0xf]
    %v90 = vld [vmem:[#allocation5 + $0xc] sm:$0xf]
    %v91 = vld [vmem:[#allocation5 + $0x10] sm:$0xf]
    %v92 = vld [vmem:[#allocation5 + $0x14] sm:$0xf]
    %v93 = vld [vmem:[#allocation5 + $0x18] sm:$0xf]
    %v94 = vld [vmem:[#allocation5 + $0x1c] sm:$0xf]
    %v95 = vld [vmem:[#allocation5 + $0x20] sm:$0xf]
    %v96 = vld [vmem:[#allocation5 + $0x24] sm:$0xf]
    %v97 = vld [vmem:[#allocation5 + $0x28] sm:$0xf]
    %v98 = vld [vmem:[#allocation5 + $0x2c] sm:$0xf]
    %v99 = vld [vmem:[#allocation5 + $0x30] sm:$0xf]
    %v100 = vld [vmem:[#allocation5 + $0x34] sm:$0xf]
    %v101 = vld [vmem:[#allocation5 + $0x38] sm:$0xf]
    %v102 = vld [vmem:[#allocation5 + $0x3c] sm:$0xf]
    %v103 = vld [vmem:[#allocation5 + $0x40] sm:$0xf]
    %v104 = vld [vmem:[#allocation5 + $0x44] sm:$0xf]
    %v105 = vld [vmem:[#allocation5 + $0x48] sm:$0xf]
    %v106 = vld [vmem:[#allocation5 + $0x4c] sm:$0xf]
    %v107 = vld [vmem:[#allocation5 + $0x50] sm:$0xf]
    %v108 = vld [vmem:[#allocation5 + $0x54] sm:$0xf]
    %v109 = vld [vmem:[#allocation5 + $0x58] sm:$0xf]
    %v110 = vld [vmem:[#allocation5 + $0x5c] sm:$0xf]
    %v111 = vld [vmem:[#allocation5 + $0x60] sm:$0xf]
    %v112 = vld [vmem:[#allocation5 + $0x64] sm:$0xf]
    %v113 = vld [vmem:[#allocation5 + $0x68] sm:$0xf]
    %v114 = vld [vmem:[#allocation5 + $0x6c] sm:$0xf]
    %v115 = vld [vmem:[#allocation5 + $0x70] sm:$0xf]
    %v116 = vld [vmem:[#allocation5 + $0x74] sm:$0xf]
    %v117 = vld [vmem:[#allocation5 + $0x78] sm:$0xf]
    %v118 = vld [vmem:[#allocation5 + $0x7c] sm:$0xf]
    %v151 = vunpack.c.l.b16 %v87
    %v152 = vunpack.c.l.b16 %v88
    %v153 = vunpack.c.l.b16 %v89
    %v154 = vunpack.c.l.b16 %v90
    %v155 = vunpack.c.l.b16 %v91
    %v156 = vunpack.c.l.b16 %v92
    %v157 = vunpack.c.l.b16 %v93
    %v158 = vunpack.c.l.b16 %v94
    %v159 = vunpack.c.l.b16 %v95
    %v160 = vunpack.c.l.b16 %v96
    %v161 = vunpack.c.l.b16 %v97
    %v162 = vunpack.c.l.b16 %v98
    %v163 = vunpack.c.l.b16 %v99
    %v164 = vunpack.c.l.b16 %v100
    %v165 = vunpack.c.l.b16 %v101
    %v166 = vunpack.c.l.b16 %v102
    %v167 = vunpack.c.l.b16 %v103
    %v168 = vunpack.c.l.b16 %v104
    %v169 = vunpack.c.l.b16 %v105
    %v170 = vunpack.c.l.b16 %v106
    %v171 = vunpack.c.l.b16 %v107
    %v172 = vunpack.c.l.b16 %v108
    %v173 = vunpack.c.l.b16 %v109
    %v174 = vunpack.c.l.b16 %v110
    %v175 = vunpack.c.l.b16 %v111
    %v176 = vunpack.c.l.b16 %v112
    %v177 = vunpack.c.l.b16 %v113
    %v178 = vunpack.c.l.b16 %v114
    %v179 = vunpack.c.l.b16 %v115
    %v180 = vunpack.c.l.b16 %v116
    %v181 = vunpack.c.l.b16 %v117
    %v182 = vunpack.c.l.b16 %v118
    %v183 = vpack.c.b16 %v152, %v151
    %v184 = vpack.c.b16 %v154, %v153
    %v185 = vpack.c.b16 %v156, %v155
    %v186 = vpack.c.b16 %v158, %v157
    %v187 = vpack.c.b16 %v160, %v159
    %v188 = vpack.c.b16 %v162, %v161
    %v189 = vpack.c.b16 %v164, %v163
    %v190 = vpack.c.b16 %v166, %v165
    %v191 = vpack.c.b16 %v168, %v167
    %v192 = vpack.c.b16 %v170, %v169
    %v193 = vpack.c.b16 %v172, %v171
    %v194 = vpack.c.b16 %v174, %v173
    %v195 = vpack.c.b16 %v176, %v175
    %v196 = vpack.c.b16 %v178, %v177
    %v197 = vpack.c.b16 %v180, %v179
    %v198 = vpack.c.b16 %v182, %v181
    %215 = vmatpush.bf16.msra.mxu0 %v190
    %216 = vmatpush.bf16.msra.mxu0 %v189
    %217 = vmatpush.bf16.msra.mxu0 %v188
    %218 = vmatpush.bf16.msra.mxu0 %v187
    %219 = vmatpush.bf16.msra.mxu0 %v186
    %220 = vmatpush.bf16.msra.mxu0 %v185
    %221 = vmatpush.bf16.msra.mxu0 %v184
    %222 = vmatpush.bf16.msra.mxu0 %v183
    %223 = vmatmul.bf16.gmra.mxu0 %v85
    %v224 = vpop.f32.mrf.mxu0
    %v225 = vadd.f32 0.0, %v224
    %v226 = vpop.f32.mrf.mxu0
    %v227 = vadd.f32 0.0, %v226
    %228 = vdwg.mxu0
    %229 = vmatpush.bf16.msra.mxu0 %v198
    %230 = vmatpush.bf16.msra.mxu0 %v197
    %231 = vmatpush.bf16.msra.mxu0 %v196
    %232 = vmatpush.bf16.msra.mxu0 %v195
    %233 = vmatpush.bf16.msra.mxu0 %v194
    %234 = vmatpush.bf16.msra.mxu0 %v193
    %235 = vmatpush.bf16.msra.mxu0 %v192
    %236 = vmatpush.bf16.msra.mxu0 %v191
    %237 = vmatmul.bf16.gmra.mxu0 %v86
    %v238 = vpop.f32.mrf.mxu0
    %v239 = vadd.f32 %v225, %v238
    %v240 = vpop.f32.mrf.mxu0
    %v241 = vadd.f32 %v227, %v240
    %242 = vdwg.mxu0
    %v243 = vmax.f32 %v239, 0.0
    %v244 = vmax.f32 %v241, 0.0
    %v245 = vpack.c.bf16 %v244, %v243
    %v246 = vld [vmem:[#allocation7] sm:$0xf]
    %v247 = vld [vmem:[#allocation7 + $0x4] sm:$0xf]
    %v248 = vld [vmem:[#allocation7 + $0x8] sm:$0xf]
    %v249 = vld [vmem:[#allocation7 + $0xc] sm:$0xf]
    %v250 = vld [vmem:[#allocation7 + $0x10] sm:$0xf]
    %v251 = vld [vmem:[#allocation7 + $0x14] sm:$0xf]
    %v252 = vld [vmem:[#allocation7 + $0x18] sm:$0xf]
    %v253 = vld [vmem:[#allocation7 + $0x1c] sm:$0xf]
    %v254 = vld [vmem:[#allocation7 + $0x20] sm:$0xf]
    %v255 = vld [vmem:[#allocation7 + $0x24] sm:$0xf]
    %v256 = vld [vmem:[#allocation7 + $0x28] sm:$0xf]
    %v257 = vld [vmem:[#allocation7 + $0x2c] sm:$0xf]
    %v258 = vld [vmem:[#allocation7 + $0x30] sm:$0xf]
    %v259 = vld [vmem:[#allocation7 + $0x34] sm:$0xf]
    %v260 = vld [vmem:[#allocation7 + $0x38] sm:$0xf]
    %v261 = vld [vmem:[#allocation7 + $0x3c] sm:$0xf]
    %v278 = vunpack.c.l.b16 %v246
    %v279 = vunpack.c.l.b16 %v247
    %v280 = vunpack.c.l.b16 %v248
    %v281 = vunpack.c.l.b16 %v249
    %v282 = vunpack.c.l.b16 %v250
    %v283 = vunpack.c.l.b16 %v251
    %v284 = vunpack.c.l.b16 %v252
    %v285 = vunpack.c.l.b16 %v253
    %v286 = vunpack.c.l.b16 %v254
    %v287 = vunpack.c.l.b16 %v255
    %v288 = vunpack.c.l.b16 %v256
    %v289 = vunpack.c.l.b16 %v257
    %v290 = vunpack.c.l.b16 %v258
    %v291 = vunpack.c.l.b16 %v259
    %v292 = vunpack.c.l.b16 %v260
    %v293 = vunpack.c.l.b16 %v261
    %v294 = vpack.c.b16 %v279, %v278
    %v295 = vpack.c.b16 %v281, %v280
    %v296 = vpack.c.b16 %v283, %v282
    %v297 = vpack.c.b16 %v285, %v284
    %v298 = vpack.c.b16 %v287, %v286
    %v299 = vpack.c.b16 %v289, %v288
    %v300 = vpack.c.b16 %v291, %v290
    %v301 = vpack.c.b16 %v293, %v292
    %310 = vmatpush.bf16.msra.mxu0 %v301
    %311 = vmatpush.bf16.msra.mxu0 %v300
    %312 = vmatpush.bf16.msra.mxu0 %v299
    %313 = vmatpush.bf16.msra.mxu0 %v298
    %314 = vmatpush.bf16.msra.mxu0 %v297
    %315 = vmatpush.bf16.msra.mxu0 %v296
    %316 = vmatpush.bf16.msra.mxu0 %v295
    %317 = vmatpush.bf16.msra.mxu0 %v294
    %318 = vmatmul.bf16.gmra.mxu0 %v245
    %v319 = vpop.f32.mrf.mxu0
    %v320 = vadd.f32 0.0, %v319
    %v321 = vpop.f32.mrf.mxu0
    %v322 = vadd.f32 0.0, %v321
    %323 = vdwg.mxu0
    %v324 = vmax.f32 %v320, 0.0
    %v325 = vmax.f32 %v322, 0.0
    %v326 = vpack.c.bf16 %v325, %v324
    %v327 = vld [vmem:[#allocation8] sm:$0xf]
    %v328 = vld [vmem:[#allocation8 + $0x4] sm:$0xf]
    %v329 = vld [vmem:[#allocation8 + $0x8] sm:$0xf]
    %v330 = vld [vmem:[#allocation8 + $0xc] sm:$0xf]
    %v331 = vld [vmem:[#allocation8 + $0x10] sm:$0xf]
    %v332 = vld [vmem:[#allocation8 + $0x14] sm:$0xf]
    %v333 = vld [vmem:[#allocation8 + $0x18] sm:$0xf]
    %v334 = vld [vmem:[#allocation8 + $0x1c] sm:$0xf]
    %v335 = vld [vmem:[#allocation8 + $0x20] sm:$0xf]
    %v336 = vld [vmem:[#allocation8 + $0x24] sm:$0xf]
    %v337 = vld [vmem:[#allocation8 + $0x28] sm:$0xf]
    %v338 = vld [vmem:[#allocation8 + $0x2c] sm:$0xf]
    %v339 = vld [vmem:[#allocation8 + $0x30] sm:$0xf]
    %v340 = vld [vmem:[#allocation8 + $0x34] sm:$0xf]
    %v341 = vld [vmem:[#allocation8 + $0x38] sm:$0xf]
    %v342 = vld [vmem:[#allocation8 + $0x3c] sm:$0xf]
    %v359 = vunpack.c.l.b16 %v327
    %v360 = vunpack.c.l.b16 %v328
    %v361 = vunpack.c.l.b16 %v329
    %v362 = vunpack.c.l.b16 %v330
    %v363 = vunpack.c.l.b16 %v331
    %v364 = vunpack.c.l.b16 %v332
    %v365 = vunpack.c.l.b16 %v333
    %v366 = vunpack.c.l.b16 %v334
    %v367 = vunpack.c.l.b16 %v335
    %v368 = vunpack.c.l.b16 %v336
    %v369 = vunpack.c.l.b16 %v337
    %v370 = vunpack.c.l.b16 %v338
    %v371 = vunpack.c.l.b16 %v339
    %v372 = vunpack.c.l.b16 %v340
    %v373 = vunpack.c.l.b16 %v341
    %v374 = vunpack.c.l.b16 %v342
    %v375 = vpack.c.b16 %v360, %v359
    %v376 = vpack.c.b16 %v362, %v361
    %v377 = vpack.c.b16 %v364, %v363
    %v378 = vpack.c.b16 %v366, %v365
    %v379 = vpack.c.b16 %v368, %v367
    %v380 = vpack.c.b16 %v370, %v369
    %v381 = vpack.c.b16 %v372, %v371
    %v382 = vpack.c.b16 %v374, %v373
    %391 = vmatpush.bf16.msra.mxu0 %v382
    %392 = vmatpush.bf16.msra.mxu0 %v381
    %393 = vmatpush.bf16.msra.mxu0 %v380
    %394 = vmatpush.bf16.msra.mxu0 %v379
    %395 = vmatpush.bf16.msra.mxu0 %v378
    %396 = vmatpush.bf16.msra.mxu0 %v377
    %397 = vmatpush.bf16.msra.mxu0 %v376
    %398 = vmatpush.bf16.msra.mxu0 %v375
    %399 = vmatmul.bf16.gmra.mxu0 %v326
    %v400 = vpop.f32.mrf.mxu0
    %v401 = vadd.f32 0.0, %v400
    %v402 = vpop.f32.mrf.mxu0
    %v403 = vadd.f32 0.0, %v402
    %404 = vdwg.mxu0
    %405 = vst [vmem:[#allocation10] sm:$0xff] %v401
    %406 = vst [vmem:[#allocation10 + $0x8] sm:$0xff] %v403
    // Predicated region
    $region34: #{tpu_custom_call.1} parent=1 // pred_check
      _
    $region35: #{tpu_custom_call.1} parent=1 // pred_check_branch
      %408 = sbr.rel (0) target = $region37
    $region36: #{tpu_custom_call.1} parent=1 // pred_region
      %410 = vsyncadd [#allocation4], 0
      %s411 = sshll.u32 [#allocation10], 4
      %s412 = int_to_ptr.vmem [resolvable:$true] %s411
      %s413 = sshll.u32 %s4, 4
      %s414 = int_to_ptr.hbm [resolvable:$true] %s413
      %419 = dma.vmem_to_hbm [thread:$0]  %s412, 256, %s414, [#allocation4], 128, 128, 8
    $region37: #{tpu_custom_call.1} parent=1 // pred_fallthru
      _
    // Predicated region
    $region38: #{tpu_custom_call.1} parent=1 // pred_check
      _
    $region39: #{tpu_custom_call.1} parent=1 // pred_check_branch
      %421 = sbr.rel (0) target = $region41
    $region40: #{tpu_custom_call.1} parent=1 // pred_region
      %423 = dma.done [#allocation4], 256
    $region41: #{tpu_custom_call.1} parent=1 // pred_fallthru
      _
    %424 = vsyncpa [#allocation3], 1
    %425 = vsyncpa [#allocation6], 1
    %426 = vsyncpa [#allocation9], 1
    %427 = vsyncpa [#allocation4], 1

// kernel: tpu_custom_call.1
$region0: #{tpu_custom_call.1}
  #allocation0 [shape = 'u32[]', space=smem, size = 0x4, offset = 0x4, fixed_abs, tag = 'smem constant byte address 0x4 - core index']
  #allocation1 [shape = 'u32[72,128]{1,0:T(1,128)}', space=vmem, size = 0x9000, scoped, tag = 'internal scratch']
  %s0 = inlined_call_operand.hbm [shape: f32[12,256], index: 0, kind: input, shape index: {}]
  %s1 = inlined_call_operand.hbm [shape: bf16[256,128], index: 1, kind: input, shape index: {}]
  %s2 = inlined_call_operand.hbm [shape: bf16[128,128], index: 2, kind: input, shape index: {}]
  %s3 = inlined_call_operand.hbm [shape: bf16[128,128], index: 3, kind: input, shape index: {}]
  %s4 = inlined_call_operand.hbm [shape: f32[12,128], index: 4, kind: output, shape index: {}]
  %s5 = sld [smem:[#allocation0]]
  $region42: #{tpu_custom_call.1} parent=0
    _
  %s7 = ssub.s32 1, %s5
  %s8 = scalar_select 0, %s7, %s5
  $region1: #{tpu_custom_call.1} parent=0
    #allocation2 [shape = 'u8[16384]{0}', space=vmem, size = 0x4000, scoped, tag = 'input window, operand 0, single buffered']
    #allocation3 [shape = 's32[1]{0}', space=sflag, size = 0x4, scoped, tag = 'scoped memory for tpu_custom_call.1']
    #allocation4 [shape = 's32[1]{0}', space=sflag, size = 0x4, scoped, tag = 'scoped memory for tpu_custom_call.1']
    #allocation5 [shape = 'u8[65536]{0}', space=vmem, size = 0x10000, scoped, tag = 'input window, operand 1, single buffered']
    #allocation6 [shape = 's32[1]{0}', space=sflag, size = 0x4, scoped, tag = 'scoped memory for tpu_custom_call.1']
    #allocation7 [shape = 'u8[32768]{0}', space=vmem, size = 0x8000, scoped, tag = 'input window, operand 2, single buffered']
    #allocation8 [shape = 'u8[32768]{0}', space=vmem, size = 0x8000, scoped, tag = 'input window, operand 3, single buffered']
    #allocation9 [shape = 's32[1]{0}', space=sflag, size = 0x4, scoped, tag = 'scoped memory for tpu_custom_call.1']
    #allocation10 [shape = 'u8[8192]{0}', space=vmem, size = 0x2000, scoped, tag = 'output window, operand 0, single buffered']
    %9 = vsyncpa [#allocation3], 0
    %10 = vsyncpa [#allocation6], 0
    %11 = vsyncpa [#allocation9], 0
    %12 = vsyncpa [#allocation4], 0
    // Predicated region
    $region2: #{tpu_custom_call.1} parent=1 // pred_check
      _
    $region3: #{tpu_custom_call.1} parent=1 // pred_check_branch
      %14 = sbr.rel (0) target = $region5
    $region4: #{tpu_custom_call.1} parent=1 // pred_region
      %16 = vsyncadd [#allocation3], 0
      %s17 = sshll.u32 %s0, 4
      %s18 = int_to_ptr.hbm [resolvable:$true] %s17
      %s19 = sshll.u32 [#allocation2], 4
      %s20 = int_to_ptr.vmem [resolvable:$true] %s19
      %25 = dma.hbm_to_vmem [thread:$0]  %s18, 512, %s20, [#allocation3], 256, 256, 16
    $region5: #{tpu_custom_call.1} parent=1 // pred_fallthru
      _
    // Predicated region
    $region6: #{tpu_custom_call.1} parent=1 // pred_check
      _
    $region7: #{tpu_custom_call.1} parent=1 // pred_check_branch
      %27 = sbr.rel (0) target = $region9
    $region8: #{tpu_custom_call.1} parent=1 // pred_region
      %29 = vsyncadd [#allocation6], 0
      %s30 = sshll.u32 %s1, 4
      %s31 = int_to_ptr.hbm [resolvable:$true] %s30
      %s32 = sshll.u32 [#allocation5], 4
      %s33 = int_to_ptr.vmem [resolvable:$true] %s32
      %38 = dma.hbm_to_vmem [thread:$0]  %s31, 2048, %s33, [#allocation6], 64, 64, 4
    $region9: #{tpu_custom_call.1} parent=1 // pred_fallthru
      _
    // Predicated region
    $region10: #{tpu_custom_call.1} parent=1 // pred_check
      _
    $region11: #{tpu_custom_call.1} parent=1 // pred_check_branch
      %40 = sbr.rel (0) target = $region13
    $region12: #{tpu_custom_call.1} parent=1 // pred_region
      %42 = vsyncadd [#allocation6], 0
      %s43 = sshll.u32 %s2, 4
      %s44 = int_to_ptr.hbm [resolvable:$true] %s43
      %s45 = sshll.u32 [#allocation7], 4
      %s46 = int_to_ptr.vmem [resolvable:$true] %s45
      %51 = dma.hbm_to_vmem [thread:$0]  %s44, 1024, %s46, [#allocation6], 64, 64, 4
    $region13: #{tpu_custom_call.1} parent=1 // pred_fallthru
      _
    // Predicated region
    $region14: #{tpu_custom_call.1} parent=1 // pred_check
      _
    $region15: #{tpu_custom_call.1} parent=1 // pred_check_branch
      %53 = sbr.rel (0) target = $region17
    $region16: #{tpu_custom_call.1} parent=1 // pred_region
      %55 = vsyncadd [#allocation9], 0
      %s56 = sshll.u32 %s3, 4
      %s57 = int_to_ptr.hbm [resolvable:$true] %s56
      %s58 = sshll.u32 [#allocation8], 4
      %s59 = int_to_ptr.vmem [resolvable:$true] %s58
      %64 = dma.hbm_to_vmem [thread:$0]  %s57, 1024, %s59, [#allocation9], 64, 64, 4
    $region17: #{tpu_custom_call.1} parent=1 // pred_fallthru
      _
    // Predicated region
    $region18: #{tpu_custom_call.1} parent=1 // pred_check
      _
    $region19: #{tpu_custom_call.1} parent=1 // pred_check_branch
      %66 = sbr.rel (0) target = $region21
    $region20: #{tpu_custom_call.1} parent=1 // pred_region
      %68 = dma.done [#allocation3], 512
    $region21: #{tpu_custom_call.1} parent=1 // pred_fallthru
      _
    // Predicated region
    $region22: #{tpu_custom_call.1} parent=1 // pred_check
      _
    $region23: #{tpu_custom_call.1} parent=1 // pred_check_branch
      %70 = sbr.rel (0) target = $region25
    $region24: #{tpu_custom_call.1} parent=1 // pred_region
      %72 = dma.done [#allocation6], 2048
    $region25: #{tpu_custom_call.1} parent=1 // pred_fallthru
      _
    // Predicated region
    $region26: #{tpu_custom_call.1} parent=1 // pred_check
      _
    $region27: #{tpu_custom_call.1} parent=1 // pred_check_branch
      %74 = sbr.rel (0) target = $region29
    $region28: #{tpu_custom_call.1} parent=1 // pred_region
      %76 = dma.done [#allocation6], 1024
    $region29: #{tpu_custom_call.1} parent=1 // pred_fallthru
      _
    // Predicated region
    $region30: #{tpu_custom_call.1} parent=1 // pred_check
      _
    $region31: #{tpu_custom_call.1} parent=1 // pred_check_branch
      %78 = sbr.rel (0) target = $region33
    $region32: #{tpu_custom_call.1} parent=1 // pred_region
      %80 = dma.done [#allocation9], 1024
    $region33: #{tpu_custom_call.1} parent=1 // pred_fallthru
      _
    %v81 = vld [vmem:[#allocation2] sm:$0xff]
    %v82 = vld [vmem:[#allocation2 + $0x8] sm:$0xff]
    %v83 = vld [vmem:[#allocation2 + $0x10] sm:$0xff]
    %v84 = vld [vmem:[#allocation2 + $0x18] sm:$0xff]
    %v85 = vpack.c.bf16 %v83, %v81
    %v86 = vpack.c.bf16 %v84, %v82
    %v87 = vld [vmem:[#allocation5] sm:$0xf]
    %v88 = vld [vmem:[#allocation5 + $0x4] sm:$0xf]
    %v89 = vld [vmem:[#allocation5 + $0x8] sm:$0xf]
    %v90 = vld [vmem:[#allocation5 + $0xc] sm:$0xf]
    %v91 = vld [vmem:[#allocation5 + $0x10] sm:$0xf]
    %v92 = vld [vmem:[#allocation5 + $0x14] sm:$0xf]
    %v93 = vld [vmem:[#allocation5 + $0x18] sm:$0xf]
    %v94 = vld [vmem:[#allocation5 + $0x1c] sm:$0xf]
    %v95 = vld [vmem:[#allocation5 + $0x20] sm:$0xf]
    %v96 = vld [vmem:[#allocation5 + $0x24] sm:$0xf]
    %v97 = vld [vmem:[#allocation5 + $0x28] sm:$0xf]
    %v98 = vld [vmem:[#allocation5 + $0x2c] sm:$0xf]
    %v99 = vld [vmem:[#allocation5 + $0x30] sm:$0xf]
    %v100 = vld [vmem:[#allocation5 + $0x34] sm:$0xf]
    %v101 = vld [vmem:[#allocation5 + $0x38] sm:$0xf]
    %v102 = vld [vmem:[#allocation5 + $0x3c] sm:$0xf]
    %v103 = vld [vmem:[#allocation5 + $0x40] sm:$0xf]
    %v104 = vld [vmem:[#allocation5 + $0x44] sm:$0xf]
    %v105 = vld [vmem:[#allocation5 + $0x48] sm:$0xf]
    %v106 = vld [vmem:[#allocation5 + $0x4c] sm:$0xf]
    %v107 = vld [vmem:[#allocation5 + $0x50] sm:$0xf]
    %v108 = vld [vmem:[#allocation5 + $0x54] sm:$0xf]
    %v109 = vld [vmem:[#allocation5 + $0x58] sm:$0xf]
    %v110 = vld [vmem:[#allocation5 + $0x5c] sm:$0xf]
    %v111 = vld [vmem:[#allocation5 + $0x60] sm:$0xf]
    %v112 = vld [vmem:[#allocation5 + $0x64] sm:$0xf]
    %v113 = vld [vmem:[#allocation5 + $0x68] sm:$0xf]
    %v114 = vld [vmem:[#allocation5 + $0x6c] sm:$0xf]
    %v115 = vld [vmem:[#allocation5 + $0x70] sm:$0xf]
    %v116 = vld [vmem:[#allocation5 + $0x74] sm:$0xf]
    %v117 = vld [vmem:[#allocation5 + $0x78] sm:$0xf]
    %v118 = vld [vmem:[#allocation5 + $0x7c] sm:$0xf]
    %v151 = vunpack.c.l.b16 %v87
    %v152 = vunpack.c.l.b16 %v88
    %v153 = vunpack.c.l.b16 %v89
    %v154 = vunpack.c.l.b16 %v90
    %v155 = vunpack.c.l.b16 %v91
    %v156 = vunpack.c.l.b16 %v92
    %v157 = vunpack.c.l.b16 %v93
    %v158 = vunpack.c.l.b16 %v94
    %v159 = vunpack.c.l.b16 %v95
    %v160 = vunpack.c.l.b16 %v96
    %v161 = vunpack.c.l.b16 %v97
    %v162 = vunpack.c.l.b16 %v98
    %v163 = vunpack.c.l.b16 %v99
    %v164 = vunpack.c.l.b16 %v100
    %v165 = vunpack.c.l.b16 %v101
    %v166 = vunpack.c.l.b16 %v102
    %v167 = vunpack.c.l.b16 %v103
    %v168 = vunpack.c.l.b16 %v104
    %v169 = vunpack.c.l.b16 %v105
    %v170 = vunpack.c.l.b16 %v106
    %v171 = vunpack.c.l.b16 %v107
    %v172 = vunpack.c.l.b16 %v108
    %v173 = vunpack.c.l.b16 %v109
    %v174 = vunpack.c.l.b16 %v110
    %v175 = vunpack.c.l.b16 %v111
    %v176 = vunpack.c.l.b16 %v112
    %v177 = vunpack.c.l.b16 %v113
    %v178 = vunpack.c.l.b16 %v114
    %v179 = vunpack.c.l.b16 %v115
    %v180 = vunpack.c.l.b16 %v116
    %v181 = vunpack.c.l.b16 %v117
    %v182 = vunpack.c.l.b16 %v118
    %v183 = vpack.c.b16 %v152, %v151
    %v184 = vpack.c.b16 %v154, %v153
    %v185 = vpack.c.b16 %v156, %v155
    %v186 = vpack.c.b16 %v158, %v157
    %v187 = vpack.c.b16 %v160, %v159
    %v188 = vpack.c.b16 %v162, %v161
    %v189 = vpack.c.b16 %v164, %v163
    %v190 = vpack.c.b16 %v166, %v165
    %v191 = vpack.c.b16 %v168, %v167
    %v192 = vpack.c.b16 %v170, %v169
    %v193 = vpack.c.b16 %v172, %v171
    %v194 = vpack.c.b16 %v174, %v173
    %v195 = vpack.c.b16 %v176, %v175
    %v196 = vpack.c.b16 %v178, %v177
    %v197 = vpack.c.b16 %v180, %v179
    %v198 = vpack.c.b16 %v182, %v181
    %215 = vmatpush.bf16.msra.mxu0 %v190
    %216 = vmatpush.bf16.msra.mxu0 %v189
    %217 = vmatpush.bf16.msra.mxu0 %v188
    %218 = vmatpush.bf16.msra.mxu0 %v187
    %219 = vmatpush.bf16.msra.mxu0 %v186
    %220 = vmatpush.bf16.msra.mxu0 %v185
    %221 = vmatpush.bf16.msra.mxu0 %v184
    %222 = vmatpush.bf16.msra.mxu0 %v183
    %223 = vmatmul.bf16.gmra.mxu0 %v85
    %v224 = vpop.f32.mrf.mxu0
    %v225 = vadd.f32 0.0, %v224
    %v226 = vpop.f32.mrf.mxu0
    %v227 = vadd.f32 0.0, %v226
    %228 = vdwg.mxu0
    %229 = vmatpush.bf16.msra.mxu0 %v198
    %230 = vmatpush.bf16.msra.mxu0 %v197
    %231 = vmatpush.bf16.msra.mxu0 %v196
    %232 = vmatpush.bf16.msra.mxu0 %v195
    %233 = vmatpush.bf16.msra.mxu0 %v194
    %234 = vmatpush.bf16.msra.mxu0 %v193
    %235 = vmatpush.bf16.msra.mxu0 %v192
    %236 = vmatpush.bf16.msra.mxu0 %v191
    %237 = vmatmul.bf16.gmra.mxu0 %v86
    %v238 = vpop.f32.mrf.mxu0
    %v239 = vadd.f32 %v225, %v238
    %v240 = vpop.f32.mrf.mxu0
    %v241 = vadd.f32 %v227, %v240
    %242 = vdwg.mxu0
    %v243 = vmax.f32 %v239, 0.0
    %v244 = vmax.f32 %v241, 0.0
    %v245 = vpack.c.bf16 %v244, %v243
    %v246 = vld [vmem:[#allocation7] sm:$0xf]
    %v247 = vld [vmem:[#allocation7 + $0x4] sm:$0xf]
    %v248 = vld [vmem:[#allocation7 + $0x8] sm:$0xf]
    %v249 = vld [vmem:[#allocation7 + $0xc] sm:$0xf]
    %v250 = vld [vmem:[#allocation7 + $0x10] sm:$0xf]
    %v251 = vld [vmem:[#allocation7 + $0x14] sm:$0xf]
    %v252 = vld [vmem:[#allocation7 + $0x18] sm:$0xf]
    %v253 = vld [vmem:[#allocation7 + $0x1c] sm:$0xf]
    %v254 = vld [vmem:[#allocation7 + $0x20] sm:$0xf]
    %v255 = vld [vmem:[#allocation7 + $0x24] sm:$0xf]
    %v256 = vld [vmem:[#allocation7 + $0x28] sm:$0xf]
    %v257 = vld [vmem:[#allocation7 + $0x2c] sm:$0xf]
    %v258 = vld [vmem:[#allocation7 + $0x30] sm:$0xf]
    %v259 = vld [vmem:[#allocation7 + $0x34] sm:$0xf]
    %v260 = vld [vmem:[#allocation7 + $0x38] sm:$0xf]
    %v261 = vld [vmem:[#allocation7 + $0x3c] sm:$0xf]
    %v278 = vunpack.c.l.b16 %v246
    %v279 = vunpack.c.l.b16 %v247
    %v280 = vunpack.c.l.b16 %v248
    %v281 = vunpack.c.l.b16 %v249
    %v282 = vunpack.c.l.b16 %v250
    %v283 = vunpack.c.l.b16 %v251
    %v284 = vunpack.c.l.b16 %v252
    %v285 = vunpack.c.l.b16 %v253
    %v286 = vunpack.c.l.b16 %v254
    %v287 = vunpack.c.l.b16 %v255
    %v288 = vunpack.c.l.b16 %v256
    %v289 = vunpack.c.l.b16 %v257
    %v290 = vunpack.c.l.b16 %v258
    %v291 = vunpack.c.l.b16 %v259
    %v292 = vunpack.c.l.b16 %v260
    %v293 = vunpack.c.l.b16 %v261
    %v294 = vpack.c.b16 %v279, %v278
    %v295 = vpack.c.b16 %v281, %v280
    %v296 = vpack.c.b16 %v283, %v282
    %v297 = vpack.c.b16 %v285, %v284
    %v298 = vpack.c.b16 %v287, %v286
    %v299 = vpack.c.b16 %v289, %v288
    %v300 = vpack.c.b16 %v291, %v290
    %v301 = vpack.c.b16 %v293, %v292
    %310 = vmatpush.bf16.msra.mxu0 %v301
    %311 = vmatpush.bf16.msra.mxu0 %v300
    %312 = vmatpush.bf16.msra.mxu0 %v299
    %313 = vmatpush.bf16.msra.mxu0 %v298
    %314 = vmatpush.bf16.msra.mxu0 %v297
    %315 = vmatpush.bf16.msra.mxu0 %v296
    %316 = vmatpush.bf16.msra.mxu0 %v295
    %317 = vmatpush.bf16.msra.mxu0 %v294
    %318 = vmatmul.bf16.gmra.mxu0 %v245
    %v319 = vpop.f32.mrf.mxu0
    %v320 = vadd.f32 0.0, %v319
    %v321 = vpop.f32.mrf.mxu0
    %v322 = vadd.f32 0.0, %v321
    %323 = vdwg.mxu0
    %v324 = vmax.f32 %v320, 0.0
    %v325 = vmax.f32 %v322, 0.0
    %v326 = vpack.c.bf16 %v325, %v324
    %v327 = vld [vmem:[#allocation8] sm:$0xf]
    %v328 = vld [vmem:[#allocation8 + $0x4] sm:$0xf]
    %v329 = vld [vmem:[#allocation8 + $0x8] sm:$0xf]
    %v330 = vld [vmem:[#allocation8 + $0xc] sm:$0xf]
    %v331 = vld [vmem:[#allocation8 + $0x10] sm:$0xf]
    %v332 = vld [vmem:[#allocation8 + $0x14] sm:$0xf]
    %v333 = vld [vmem:[#allocation8 + $0x18] sm:$0xf]
    %v334 = vld [vmem:[#allocation8 + $0x1c] sm:$0xf]
    %v335 = vld [vmem:[#allocation8 + $0x20] sm:$0xf]
    %v336 = vld [vmem:[#allocation8 + $0x24] sm:$0xf]
    %v337 = vld [vmem:[#allocation8 + $0x28] sm:$0xf]
    %v338 = vld [vmem:[#allocation8 + $0x2c] sm:$0xf]
    %v339 = vld [vmem:[#allocation8 + $0x30] sm:$0xf]
    %v340 = vld [vmem:[#allocation8 + $0x34] sm:$0xf]
    %v341 = vld [vmem:[#allocation8 + $0x38] sm:$0xf]
    %v342 = vld [vmem:[#allocation8 + $0x3c] sm:$0xf]
    %v359 = vunpack.c.l.b16 %v327
    %v360 = vunpack.c.l.b16 %v328
    %v361 = vunpack.c.l.b16 %v329
    %v362 = vunpack.c.l.b16 %v330
    %v363 = vunpack.c.l.b16 %v331
    %v364 = vunpack.c.l.b16 %v332
    %v365 = vunpack.c.l.b16 %v333
    %v366 = vunpack.c.l.b16 %v334
    %v367 = vunpack.c.l.b16 %v335
    %v368 = vunpack.c.l.b16 %v336
    %v369 = vunpack.c.l.b16 %v337
    %v370 = vunpack.c.l.b16 %v338
    %v371 = vunpack.c.l.b16 %v339
    %v372 = vunpack.c.l.b16 %v340
    %v373 = vunpack.c.l.b16 %v341
    %v374 = vunpack.c.l.b16 %v342
    %v375 = vpack.c.b16 %v360, %v359
    %v376 = vpack.c.b16 %v362, %v361
    %v377 = vpack.c.b16 %v364, %v363
    %v378 = vpack.c.b16 %v366, %v365
    %v379 = vpack.c.b16 %v368, %v367
    %v380 = vpack.c.b16 %v370, %v369
    %v381 = vpack.c.b16 %v372, %v371
    %v382 = vpack.c.b16 %v374, %v373
    %391 = vmatpush.bf16.msra.mxu0 %v382
    %392 = vmatpush.bf16.msra.mxu0 %v381
    %393 = vmatpush.bf16.msra.mxu0 %v380
    %394 = vmatpush.bf16.msra.mxu0 %v379
    %395 = vmatpush.bf16.msra.mxu0 %v378
    %396 = vmatpush.bf16.msra.mxu0 %v377
    %397 = vmatpush.bf16.msra.mxu0 %v376
    %398 = vmatpush.bf16.msra.mxu0 %v375
    %399 = vmatmul.bf16.gmra.mxu0 %v326
    %v400 = vpop.f32.mrf.mxu0
    %v401 = vadd.f32 0.0, %v400
    %v402 = vpop.f32.mrf.mxu0
    %v403 = vadd.f32 0.0, %v402
    %404 = vdwg.mxu0
    %405 = vst [vmem:[#allocation10] sm:$0xff] %v401
    %406 = vst [vmem:[#allocation10 + $0x8] sm:$0xff] %v403
    // Predicated region
    $region34: #{tpu_custom_call.1} parent=1 // pred_check
      _
    $region35: #{tpu_custom_call.1} parent=1 // pred_check_branch
      %408 = sbr.rel (0) target = $region37
    $region36: #{tpu_custom_call.1} parent=1 // pred_region
      %410 = vsyncadd [#allocation4], 0
      %s411 = sshll.u32 [#allocation10], 4
      %s412 = int_to_ptr.vmem [resolvable:$true] %s411
      %s413 = sshll.u32 %s4, 4
      %s414 = int_to_ptr.hbm [resolvable:$true] %s413
      %419 = dma.vmem_to_hbm [thread:$0]  %s412, 256, %s414, [#allocation4], 128, 128, 8
    $region37: #{tpu_custom_call.1} parent=1 // pred_fallthru
      _
    // Predicated region
    $region38: #{tpu_custom_call.1} parent=1 // pred_check
      _
    $region39: #{tpu_custom_call.1} parent=1 // pred_check_branch
      %421 = sbr.rel (0) target = $region41
    $region40: #{tpu_custom_call.1} parent=1 // pred_region
      %423 = dma.done [#allocation4], 256
    $region41: #{tpu_custom_call.1} parent=1 // pred_fallthru
      _
    %424 = vsyncpa [#allocation3], 1
    %425 = vsyncpa [#allocation6], 1
    %426 = vsyncpa [#allocation9], 1
    %427 = vsyncpa [#allocation4], 1

</llo_original>
